<compile_context>
chip_gen: v7x
topology: tpu7x:2x2x1
jax: 0.10.0
libtpu: 0.0.40
codegen_flags: <defaults>
</compile_context>

<pallas_src>
import functools

import jax
import jax.numpy as jnp
from jax.experimental import pallas as pl
from jax.experimental.pallas import tpu as pltpu


def _round_up(x, m):
    return (x + m - 1) // m * m


def _ann_kernel(x_ref, w0T_ref, b0_ref, wT_ref, b_ref, o_ref, *, n_layers):
    """Fused ANN forward for one M-tile.

    h = x @ w0T + b0
    repeat (n_layers - 1): h = relu(h) @ wT + b     (dropout = identity, eval)

    Matmul operands are bf16 (MXU native), accumulation and elementwise math
    are f32 (v5e VPU has no bf16 VALU).
    """
    w_dtype = w0T_ref.dtype
    # fc0: cast x to the weight dtype right at the MXU input (cheap VPU op).
    h = jnp.dot(x_ref[...].astype(w_dtype), w0T_ref[...],
                preferred_element_type=jnp.float32)
    h = h + b0_ref[...]

    if n_layers > 1:
        # Hoist the bias broadcast out of the unrolled loop (no CSE of
        # broadcast_in_dim otherwise).
        bias = jnp.broadcast_to(b_ref[...], o_ref.shape)
        for _ in range(n_layers - 1):
            a = jnp.maximum(h, 0.0).astype(wT_ref.dtype)   # ReLU in f32, downcast at MXU input
            h = jnp.dot(a, wT_ref[...], preferred_element_type=jnp.float32) + bias

    o_ref[...] = h.astype(o_ref.dtype)


def _pick_tm(M, K, N, n_layers, weight_bytes, x_itemsize, out_itemsize=4):
    """M-tile selection.

    - M < 16: one full-M tile (grid=(1,), no padding).
    - otherwise: aim for >= 2 grid steps (v7x megacore), cap at 256 (128 when
      the layer loop is deep), shrink to a VMEM budget, and prefer a tile that
      divides M exactly so no jnp.pad copy of x is needed.
    """
    if M < 16:
        return M
    cap = 128 if n_layers > 2 else 256
    tm = min(cap, _round_up(pl.cdiv(M, 2), 8))

    # VMEM budget: single-buffered weights + double-buffered x tile + double-
    # buffered out tile; keep headroom under v7x's 64 MiB physical VMEM.
    budget = 48 * 1024 * 1024

    def vmem_need(t):
        return weight_bytes + 2 * t * K * x_itemsize + 2 * t * N * out_itemsize

    while tm > 8 and vmem_need(tm) > budget:
        tm = max(8, _round_up(tm // 2, 8))

    # Prefer an exact divisor of M (multiple of 8, not too small) -> no padding.
    lo = max(64, tm // 2)
    for t in range(tm - tm % 8, lo - 1, -8):
        if M % t == 0:
            return t
    # No good divisor: rebalance the tile so the padded tail is < 8 rows.
    g = pl.cdiv(M, tm)
    return min(tm, _round_up(pl.cdiv(M, g), 8))


def _build_call(kernel, grid_m, tm, K, N, m_pad, vmem_limit, single_buffer_weights):
    def resident(shape):
        index_map = lambda i: (0,) * len(shape)
        if single_buffer_weights:
            # Fetched once, never revisited -> no point double-buffering.
            return pl.BlockSpec(shape, index_map, pipeline_mode=pl.Buffered(1))
        return pl.BlockSpec(shape, index_map)

    return pl.pallas_call(
        kernel,
        out_shape=jax.ShapeDtypeStruct((m_pad, N), jnp.float32),
        grid_spec=pltpu.PrefetchScalarGridSpec(
            num_scalar_prefetch=0,
            grid=(grid_m,),
            in_specs=[
                pl.BlockSpec((tm, K), lambda i: (i, 0)),   # x M-tile (streamed)
                resident((K, N)),                          # w0T (resident, bf16)
                resident((1, N)),                          # b0  (resident, f32)
                resident((N, N)),                          # wT  (resident, bf16)
                resident((1, N)),                          # b   (resident, f32)
            ],
            out_specs=pl.BlockSpec((tm, N), lambda i: (i, 0)),
        ),
        compiler_params=pltpu.CompilerParams(
            dimension_semantics=("parallel",),   # M tiles are independent
            vmem_limit_bytes=vmem_limit,
        ),
    )


def ann_forward(params, x, n_ANNlayers=1, *, tm=None):
    """Pallas equivalent of ANN.forward (AlphaDropout in eval mode = identity).

    params must come from prepare_params(): (w0T [K,N] bf16, b0 [1,N] f32,
    wT [N,N] bf16, b [1,N] f32).  x is [M, K] (batch-major, feature last).
    Output is f32 [M, N].
    """
    w0T, b0, wT, b = params
    M, K = x.shape
    K2, N = w0T.shape
    assert K == K2, "input feature dim mismatch"
    assert wT.shape == (N, N) and b0.shape == (1, N) and b.shape == (1, N)
    assert K % 128 == 0, "TODO(synk): pad K for non-128-multiple input_size"
    assert N % 128 == 0, "TODO(synk): pad N for non-128-multiple reduced_size"

    weight_bytes = (w0T.size * w0T.dtype.itemsize + wT.size * wT.dtype.itemsize
                    + b0.size * b0.dtype.itemsize + b.size * b.dtype.itemsize)

    if tm is None:
        tm = _pick_tm(M, K, N, n_ANNlayers, weight_bytes, x.dtype.itemsize)
    tm = min(tm, M)
    grid_m = pl.cdiv(M, tm)
    m_pad = grid_m * tm

    x_in = x
    if m_pad != M:
        # TODO(synk): mask the final store instead of padding; with the tm
        # policy above the pad is at most a few rows, so the copy is tiny.
        x_in = jnp.pad(x, ((0, m_pad - M), (0, 0)))

    vmem_need = (weight_bytes
                 + 2 * tm * K * x_in.dtype.itemsize    # x tile, double-buffered
                 + 2 * tm * N * 4)                     # f32 out tile, double-buffered
    vmem_limit = int(min(max(vmem_need + (4 << 20), 32 << 20), 64 << 20))

    kernel = functools.partial(_ann_kernel, n_layers=n_ANNlayers)
    args = (x_in, w0T, b0, wT, b)

    try:
        out = _build_call(kernel, grid_m, tm, K, N, m_pad, vmem_limit,
                          single_buffer_weights=True)(*args)
    except Exception:
        # pl.Buffered(1) not supported on this JAX version -> default buffering.
        out = _build_call(kernel, grid_m, tm, K, N, m_pad, vmem_limit,
                          single_buffer_weights=False)(*args)

    return out[:M] if m_pad != M else out


def init_params(key, input_size, reduced_size, dtype=jnp.float32):
    """Raw params in PyTorch nn.Linear convention: w is [out, in]."""
    k0, k1, k2, k3 = jax.random.split(key, 4)
    s0 = 1.0 / (input_size ** 0.5)
    s1 = 1.0 / (reduced_size ** 0.5)
    w0 = jax.random.uniform(k0, (reduced_size, input_size), dtype, -s0, s0)
    b0 = jax.random.uniform(k1, (reduced_size,), dtype, -s0, s0)
    w = jax.random.uniform(k2, (reduced_size, reduced_size), dtype, -s1, s1)
    b = jax.random.uniform(k3, (reduced_size,), dtype, -s1, s1)
    return (w0, b0, w, b)


def prepare_params(raw_params):
    """One-time layout/dtype prep: transpose weights to [in, out] bf16 (MXU
    operands), biases to [1, out] f32 (added post-accumulation)."""
    w0, b0, w, b = raw_params
    return (
        jnp.transpose(w0).astype(jnp.bfloat16),   # [K, N] bf16
        b0.reshape(1, -1).astype(jnp.float32),    # [1, N] f32
        jnp.transpose(w).astype(jnp.bfloat16),    # [N, N] bf16
        b.reshape(1, -1).astype(jnp.float32),     # [1, N] f32
    )


if __name__ == "__main__":
    # Small shapes consistent with the module: batch=8, input_size=256, reduced_size=128.
    batch, input_size, reduced_size = 8, 256, 128
    n_ANNlayers = 2   # exercise both the fc0 path and the relu->fc path

    key = jax.random.PRNGKey(0)
    kx, kp = jax.random.split(key)
    x = jax.random.normal(kx, (batch, input_size), jnp.float32)

    raw = init_params(kp, input_size, reduced_size)
    params = prepare_params(raw)            # weights pre-transposed + bf16, once

    out = ann_forward(params, x, n_ANNlayers=n_ANNlayers)
    out = jax.block_until_ready(out)

    # Reference in plain JAX on bf16-rounded operands (matches kernel numerics:
    # bf16 MXU inputs, f32 accumulation, f32 bias/ReLU).
    w0, b0, w, b = raw
    f32 = jnp.float32
    xb = x.astype(jnp.bfloat16).astype(f32)
    w0b = w0.astype(jnp.bfloat16).astype(f32)
    wb = w.astype(jnp.bfloat16).astype(f32)
    ref = xb @ w0b.T + b0
    for _ in range(n_ANNlayers - 1):
        a = jnp.maximum(ref, 0.0).astype(jnp.bfloat16).astype(f32)
        ref = a @ wb.T + b

    assert out.shape == (batch, reduced_size)
    assert out.dtype == jnp.float32
    err = float(jnp.max(jnp.abs(out - ref)))
    assert jnp.allclose(out, ref, atol=2e-3, rtol=2e-3), f"max abs err {err}"

    print("KERNEL_OK")
</pallas_src>

<mosaic_0001>
module attributes {stable_mosaic.version = 11 : i64} {
  func.func @_ann_kernel(%arg0: i32, %arg1: memref<8x256xf32, #tpu.memory_space<vmem>>, %arg2: memref<256x128xbf16, #tpu.memory_space<vmem>>, %arg3: memref<1x128xf32, #tpu.memory_space<vmem>>, %arg4: memref<128x128xbf16, #tpu.memory_space<vmem>>, %arg5: memref<1x128xf32, #tpu.memory_space<vmem>>, %arg6: memref<8x128xf32, #tpu.memory_space<vmem>>) attributes {dimension_semantics = [#tpu.dimension_semantics<parallel>], iteration_bounds = array<i64: 1>, scalar_prefetch = 0 : i64, scratch_operands = 0 : i64, tpu.core_type = #tpu.core_type<tc>, window_params = [{transform_indices = @transform_0, window_bounds = array<i64: 8, 256>}, {pipeline_mode = #tpu.pipeline_mode<synchronous>, transform_indices = @transform_1, window_bounds = array<i64: 256, 128>}, {pipeline_mode = #tpu.pipeline_mode<synchronous>, transform_indices = @transform_2, window_bounds = array<i64: 1, 128>}, {pipeline_mode = #tpu.pipeline_mode<synchronous>, transform_indices = @transform_3, window_bounds = array<i64: 128, 128>}, {pipeline_mode = #tpu.pipeline_mode<synchronous>, transform_indices = @transform_4, window_bounds = array<i64: 1, 128>}, {transform_indices = @transform_5, window_bounds = array<i64: 8, 128>}]} {
    %c0 = arith.constant 0 : index
    %c0_0 = arith.constant 0 : index
    %0 = vector.load %arg1[%c0, %c0_0] : memref<8x256xf32, #tpu.memory_space<vmem>>, vector<8x256xf32>
    %1 = arith.truncf %0 : vector<8x256xf32> to vector<8x256xbf16>
    %c0_1 = arith.constant 0 : index
    %c0_2 = arith.constant 0 : index
    %2 = vector.load %arg2[%c0_1, %c0_2] : memref<256x128xbf16, #tpu.memory_space<vmem>>, vector<256x128xbf16>
    %cst = arith.constant dense<0.000000e+00> : vector<8x128xf32>
    %3 = tpu.matmul %1, %2, %cst {dimension_numbers = #tpu.dot_dimension_numbers<[1], [0], [0], [1], [0, 0, 1, 1], [], []>} : vector<8x256xbf16>, vector<256x128xbf16>, vector<8x128xf32> -> vector<8x128xf32>
    %c0_3 = arith.constant 0 : index
    %c0_4 = arith.constant 0 : index
    %4 = vector.load %arg3[%c0_3, %c0_4] : memref<1x128xf32, #tpu.memory_space<vmem>>, vector<1x128xf32>
    %5 = vector.broadcast %4 : vector<1x128xf32> to vector<8x128xf32>
    %6 = arith.addf %3, %5 : vector<8x128xf32>
    %c0_5 = arith.constant 0 : index
    %c0_6 = arith.constant 0 : index
    %7 = vector.load %arg5[%c0_5, %c0_6] : memref<1x128xf32, #tpu.memory_space<vmem>>, vector<1x128xf32>
    %8 = vector.shape_cast %7 : vector<1x128xf32> to vector<1x128xf32>
    %9 = vector.broadcast %8 : vector<1x128xf32> to vector<8x128xf32>
    %cst_7 = arith.constant 0.000000e+00 : f32
    %10 = vector.broadcast %cst_7 : f32 to vector<8x128xf32>
    %11 = arith.maximumf %6, %10 : vector<8x128xf32>
    %12 = arith.truncf %11 : vector<8x128xf32> to vector<8x128xbf16>
    %c0_8 = arith.constant 0 : index
    %c0_9 = arith.constant 0 : index
    %13 = vector.load %arg4[%c0_8, %c0_9] : memref<128x128xbf16, #tpu.memory_space<vmem>>, vector<128x128xbf16>
    %cst_10 = arith.constant dense<0.000000e+00> : vector<8x128xf32>
    %14 = tpu.matmul %12, %13, %cst_10 {dimension_numbers = #tpu.dot_dimension_numbers<[1], [0], [0], [1], [0, 0, 1, 1], [], []>} : vector<8x128xbf16>, vector<128x128xbf16>, vector<8x128xf32> -> vector<8x128xf32>
    %15 = arith.addf %14, %9 : vector<8x128xf32>
    %c0_11 = arith.constant 0 : index
    %c0_12 = arith.constant 0 : index
    %16 = vector.load %arg6[%c0_11, %c0_12] : memref<8x128xf32, #tpu.memory_space<vmem>>, vector<8x128xf32>
    tpu.vector_store %arg6[%c0_11, %c0_12], %15 {strides = array<i32>} : memref<8x128xf32, #tpu.memory_space<vmem>>, vector<8x128xf32>,
    return
  }
  func.func @transform_0(%arg0: i32) -> (i32, i32) {
    %c0_i32 = arith.constant 0 : i32
    %c0_i32_0 = arith.constant 0 : i32
    return %arg0, %c0_i32 : i32, i32
  }
  func.func @transform_1(%arg0: i32) -> (i32, i32) {
    %c0_i32 = arith.constant 0 : i32
    %c0_i32_0 = arith.constant 0 : i32
    %c0_i32_1 = arith.constant 0 : i32
    return %c0_i32, %c0_i32_0 : i32, i32
  }
  func.func @transform_2(%arg0: i32) -> (i32, i32) {
    %c0_i32 = arith.constant 0 : i32
    %c0_i32_0 = arith.constant 0 : i32
    %c0_i32_1 = arith.constant 0 : i32
    return %c0_i32, %c0_i32_0 : i32, i32
  }
  func.func @transform_3(%arg0: i32) -> (i32, i32) {
    %c0_i32 = arith.constant 0 : i32
    %c0_i32_0 = arith.constant 0 : i32
    %c0_i32_1 = arith.constant 0 : i32
    return %c0_i32, %c0_i32_0 : i32, i32
  }
  func.func @transform_4(%arg0: i32) -> (i32, i32) {
    %c0_i32 = arith.constant 0 : i32
    %c0_i32_0 = arith.constant 0 : i32
    %c0_i32_1 = arith.constant 0 : i32
    return %c0_i32, %c0_i32_0 : i32, i32
  }
  func.func @transform_5(%arg0: i32) -> (i32, i32) {
    %c0_i32 = arith.constant 0 : i32
    %c0_i32_0 = arith.constant 0 : i32
    return %arg0, %c0_i32 : i32, i32
  }
}

module attributes {stable_mosaic.version = 11 : i64} {
  func.func @_ann_kernel(%arg0: i32, %arg1: memref<8x256xf32, #tpu.memory_space<vmem>>, %arg2: memref<256x128xbf16, #tpu.memory_space<vmem>>, %arg3: memref<1x128xf32, #tpu.memory_space<vmem>>, %arg4: memref<128x128xbf16, #tpu.memory_space<vmem>>, %arg5: memref<1x128xf32, #tpu.memory_space<vmem>>, %arg6: memref<8x128xf32, #tpu.memory_space<vmem>>) attributes {dimension_semantics = [#tpu.dimension_semantics<parallel>], iteration_bounds = array<i64: 1>, scalar_prefetch = 0 : i64, scratch_operands = 0 : i64, tpu.core_type = #tpu.core_type<tc>, window_params = [{transform_indices = @transform_0, window_bounds = array<i64: 8, 256>}, {pipeline_mode = #tpu.pipeline_mode<synchronous>, transform_indices = @transform_1, window_bounds = array<i64: 256, 128>}, {pipeline_mode = #tpu.pipeline_mode<synchronous>, transform_indices = @transform_2, window_bounds = array<i64: 1, 128>}, {pipeline_mode = #tpu.pipeline_mode<synchronous>, transform_indices = @transform_3, window_bounds = array<i64: 128, 128>}, {pipeline_mode = #tpu.pipeline_mode<synchronous>, transform_indices = @transform_4, window_bounds = array<i64: 1, 128>}, {transform_indices = @transform_5, window_bounds = array<i64: 8, 128>}]} {
    %c0 = arith.constant 0 : index
    %c0_0 = arith.constant 0 : index
    %0 = vector.load %arg1[%c0, %c0_0] : memref<8x256xf32, #tpu.memory_space<vmem>>, vector<8x256xf32>
    %1 = arith.truncf %0 : vector<8x256xf32> to vector<8x256xbf16>
    %c0_1 = arith.constant 0 : index
    %c0_2 = arith.constant 0 : index
    %2 = vector.load %arg2[%c0_1, %c0_2] : memref<256x128xbf16, #tpu.memory_space<vmem>>, vector<256x128xbf16>
    %cst = arith.constant dense<0.000000e+00> : vector<8x128xf32>
    %3 = tpu.matmul %1, %2, %cst {dimension_numbers = #tpu.dot_dimension_numbers<[1], [0], [0], [1], [0, 0, 1, 1], [], []>} : vector<8x256xbf16>, vector<256x128xbf16>, vector<8x128xf32> -> vector<8x128xf32>
    %c0_3 = arith.constant 0 : index
    %c0_4 = arith.constant 0 : index
    %4 = vector.load %arg3[%c0_3, %c0_4] : memref<1x128xf32, #tpu.memory_space<vmem>>, vector<1x128xf32>
    %5 = vector.broadcast %4 : vector<1x128xf32> to vector<8x128xf32>
    %6 = arith.addf %3, %5 : vector<8x128xf32>
    %c0_5 = arith.constant 0 : index
    %c0_6 = arith.constant 0 : index
    %7 = vector.load %arg5[%c0_5, %c0_6] : memref<1x128xf32, #tpu.memory_space<vmem>>, vector<1x128xf32>
    %8 = vector.shape_cast %7 : vector<1x128xf32> to vector<1x128xf32>
    %9 = vector.broadcast %8 : vector<1x128xf32> to vector<8x128xf32>
    %cst_7 = arith.constant 0.000000e+00 : f32
    %10 = vector.broadcast %cst_7 : f32 to vector<8x128xf32>
    %11 = arith.maximumf %6, %10 : vector<8x128xf32>
    %12 = arith.truncf %11 : vector<8x128xf32> to vector<8x128xbf16>
    %c0_8 = arith.constant 0 : index
    %c0_9 = arith.constant 0 : index
    %13 = vector.load %arg4[%c0_8, %c0_9] : memref<128x128xbf16, #tpu.memory_space<vmem>>, vector<128x128xbf16>
    %cst_10 = arith.constant dense<0.000000e+00> : vector<8x128xf32>
    %14 = tpu.matmul %12, %13, %cst_10 {dimension_numbers = #tpu.dot_dimension_numbers<[1], [0], [0], [1], [0, 0, 1, 1], [], []>} : vector<8x128xbf16>, vector<128x128xbf16>, vector<8x128xf32> -> vector<8x128xf32>
    %15 = arith.addf %14, %9 : vector<8x128xf32>
    %c0_11 = arith.constant 0 : index
    %c0_12 = arith.constant 0 : index
    %16 = vector.load %arg6[%c0_11, %c0_12] : memref<8x128xf32, #tpu.memory_space<vmem>>, vector<8x128xf32>
    tpu.vector_store %arg6[%c0_11, %c0_12], %15 {strides = array<i32>} : memref<8x128xf32, #tpu.memory_space<vmem>>, vector<8x128xf32>,
    return
  }
  func.func @transform_0(%arg0: i32) -> (i32, i32) {
    %c0_i32 = arith.constant 0 : i32
    %c0_i32_0 = arith.constant 0 : i32
    return %arg0, %c0_i32 : i32, i32
  }
  func.func @transform_1(%arg0: i32) -> (i32, i32) {
    %c0_i32 = arith.constant 0 : i32
    %c0_i32_0 = arith.constant 0 : i32
    %c0_i32_1 = arith.constant 0 : i32
    return %c0_i32, %c0_i32_0 : i32, i32
  }
  func.func @transform_2(%arg0: i32) -> (i32, i32) {
    %c0_i32 = arith.constant 0 : i32
    %c0_i32_0 = arith.constant 0 : i32
    %c0_i32_1 = arith.constant 0 : i32
    return %c0_i32, %c0_i32_0 : i32, i32
  }
  func.func @transform_3(%arg0: i32) -> (i32, i32) {
    %c0_i32 = arith.constant 0 : i32
    %c0_i32_0 = arith.constant 0 : i32
    %c0_i32_1 = arith.constant 0 : i32
    return %c0_i32, %c0_i32_0 : i32, i32
  }
  func.func @transform_4(%arg0: i32) -> (i32, i32) {
    %c0_i32 = arith.constant 0 : i32
    %c0_i32_0 = arith.constant 0 : i32
    %c0_i32_1 = arith.constant 0 : i32
    return %c0_i32, %c0_i32_0 : i32, i32
  }
  func.func @transform_5(%arg0: i32) -> (i32, i32) {
    %c0_i32 = arith.constant 0 : i32
    %c0_i32_0 = arith.constant 0 : i32
    return %arg0, %c0_i32 : i32, i32
  }
}

</mosaic_0001>

<llo_original>
// kernel: tpu_custom_call.1
$region0: #{tpu_custom_call.1}
  #allocation0 [shape = 'u32[]', space=smem, size = 0x4, offset = 0x4, fixed_abs, tag = 'smem constant byte address 0x4 - core index']
  #allocation1 [shape = 'u32[144,128]{1,0:T(1,128)}', space=vmem, size = 0x12000, scoped, tag = 'internal scratch']
  %s0 = inlined_call_operand.hbm [shape: f32[8,256], index: 0, kind: input, shape index: {}]
  %s1 = inlined_call_operand.hbm [shape: bf16[256,128], index: 1, kind: input, shape index: {}]
  %s2 = inlined_call_operand.vmem [shape: f32[1,128], index: 2, kind: input, shape index: {}]
  %s3 = inlined_call_operand.hbm [shape: bf16[128,128], index: 3, kind: input, shape index: {}]
  %s4 = inlined_call_operand.vmem [shape: f32[1,128], index: 4, kind: input, shape index: {}]
  %s5 = inlined_call_operand.hbm [shape: f32[8,128], index: 5, kind: output, shape index: {}]
  %s6 = sld [smem:[#allocation0]]
  $region42: #{tpu_custom_call.1} parent=0
    _
  %s8 = ssub.s32 1, %s6
  %s9 = scalar_select 0, %s8, %s6
  $region1: #{tpu_custom_call.1} parent=0
    #allocation2 [shape = 'u8[8192]{0}', space=vmem, size = 0x2000, scoped, tag = 'input window, operand 0, single buffered']
    #allocation3 [shape = 's32[1]{0}', space=sflag, size = 0x4, scoped, tag = 'scoped memory for tpu_custom_call.1']
    #allocation4 [shape = 's32[1]{0}', space=sflag, size = 0x4, scoped, tag = 'scoped memory for tpu_custom_call.1']
    #allocation5 [shape = 'u8[65536]{0}', space=vmem, size = 0x10000, scoped, tag = 'input window, operand 1, single buffered']
    #allocation6 [shape = 's32[1]{0}', space=sflag, size = 0x4, scoped, tag = 'scoped memory for tpu_custom_call.1']
    #allocation7 [shape = 'u8[32768]{0}', space=vmem, size = 0x8000, scoped, tag = 'input window, operand 3, single buffered']
    #allocation8 [shape = 'u8[4096]{0}', space=vmem, size = 0x1000, scoped, tag = 'output window, operand 0, single buffered']
    %10 = vsyncpa [#allocation3], 0
    %11 = vsyncpa [#allocation6], 0
    %12 = vsyncpa [#allocation4], 0
    // Predicated region
    $region2: #{tpu_custom_call.1} parent=1 // pred_check
      _
    $region3: #{tpu_custom_call.1} parent=1 // pred_check_branch
      %14 = sbr.rel (0) target = $region5
    $region4: #{tpu_custom_call.1} parent=1 // pred_region
      %s16 = ssub.s32 256, 256
      %17 = vsyncadd [#allocation3], %s16
      %s19 = sshll.u32 [#allocation2], 4
      %s20 = int_to_ptr.vmem [resolvable:$true] %s19
      %22 = dma.hbm_to_vmem [thread:$0]  %s0, 256, %s20, [#allocation3]
    $region5: #{tpu_custom_call.1} parent=1 // pred_fallthru
      _
    // Predicated region
    $region6: #{tpu_custom_call.1} parent=1 // pred_check
      _
    $region7: #{tpu_custom_call.1} parent=1 // pred_check_branch
      %24 = sbr.rel (0) target = $region9
    $region8: #{tpu_custom_call.1} parent=1 // pred_region
      %s26 = ssub.s32 2048, 2048
      %27 = vsyncadd [#allocation6], %s26
      %s28 = sshll.u32 [#allocation5], 4
      %s29 = int_to_ptr.vmem [resolvable:$true] %s28
      %34 = dma.hbm_to_vmem [thread:$0]  %s1, 2048, %s29, [#allocation6], 64, 64, 4
    $region9: #{tpu_custom_call.1} parent=1 // pred_fallthru
      _
    // Predicated region
    $region10: #{tpu_custom_call.1} parent=1 // pred_check
      _
    $region11: #{tpu_custom_call.1} parent=1 // pred_check_branch
      %36 = sbr.rel (0) target = $region13
    $region12: #{tpu_custom_call.1} parent=1 // pred_region
      _
    $region13: #{tpu_custom_call.1} parent=1 // pred_fallthru
      _
    // Predicated region
    $region14: #{tpu_custom_call.1} parent=1 // pred_check
      _
    $region15: #{tpu_custom_call.1} parent=1 // pred_check_branch
      %38 = sbr.rel (0) target = $region17
    $region16: #{tpu_custom_call.1} parent=1 // pred_region
      %s40 = ssub.s32 1024, 1024
      %41 = vsyncadd [#allocation6], %s40
      %s42 = sshll.u32 [#allocation7], 4
      %s43 = int_to_ptr.vmem [resolvable:$true] %s42
      %48 = dma.hbm_to_vmem [thread:$0]  %s3, 1024, %s43, [#allocation6], 64, 64, 4
    $region17: #{tpu_custom_call.1} parent=1 // pred_fallthru
      _
    // Predicated region
    $region18: #{tpu_custom_call.1} parent=1 // pred_check
      _
    $region19: #{tpu_custom_call.1} parent=1 // pred_check_branch
      %50 = sbr.rel (0) target = $region21
    $region20: #{tpu_custom_call.1} parent=1 // pred_region
      _
    $region21: #{tpu_custom_call.1} parent=1 // pred_fallthru
      _
    // Predicated region
    $region22: #{tpu_custom_call.1} parent=1 // pred_check
      _
    $region23: #{tpu_custom_call.1} parent=1 // pred_check_branch
      %52 = sbr.rel (0) target = $region25
    $region24: #{tpu_custom_call.1} parent=1 // pred_region
      %53 = dma.done [#allocation3], 256
    $region25: #{tpu_custom_call.1} parent=1 // pred_fallthru
      _
    // Predicated region
    $region26: #{tpu_custom_call.1} parent=1 // pred_check
      _
    $region27: #{tpu_custom_call.1} parent=1 // pred_check_branch
      %55 = sbr.rel (0) target = $region29
    $region28: #{tpu_custom_call.1} parent=1 // pred_region
      %56 = dma.done [#allocation6], 2048
    $region29: #{tpu_custom_call.1} parent=1 // pred_fallthru
      _
    // Predicated region
    $region30: #{tpu_custom_call.1} parent=1 // pred_check
      _
    $region31: #{tpu_custom_call.1} parent=1 // pred_check_branch
      %58 = sbr.rel (0) target = $region33
    $region32: #{tpu_custom_call.1} parent=1 // pred_region
      %59 = dma.done [#allocation6], 1024
    $region33: #{tpu_custom_call.1} parent=1 // pred_fallthru
      _
    %v61 = vld [vmem:[#allocation2] sm:$0xff]
    %v62 = vld [vmem:[#allocation2 + $0x8] sm:$0xff]
    %v63 = vpack.c.bf16 %v61, %v61
    %v64 = vpack.c.bf16 %v62, %v62
    %v65 = vld [vmem:[#allocation5] sm:$0xf]
    %v66 = vld [vmem:[#allocation5 + $0x4] sm:$0xf]
    %v67 = vld [vmem:[#allocation5 + $0x8] sm:$0xf]
    %v68 = vld [vmem:[#allocation5 + $0xc] sm:$0xf]
    %v69 = vld [vmem:[#allocation5 + $0x10] sm:$0xf]
    %v70 = vld [vmem:[#allocation5 + $0x14] sm:$0xf]
    %v71 = vld [vmem:[#allocation5 + $0x18] sm:$0xf]
    %v72 = vld [vmem:[#allocation5 + $0x1c] sm:$0xf]
    %v73 = vld [vmem:[#allocation5 + $0x20] sm:$0xf]
    %v74 = vld [vmem:[#allocation5 + $0x24] sm:$0xf]
    %v75 = vld [vmem:[#allocation5 + $0x28] sm:$0xf]
    %v76 = vld [vmem:[#allocation5 + $0x2c] sm:$0xf]
    %v77 = vld [vmem:[#allocation5 + $0x30] sm:$0xf]
    %v78 = vld [vmem:[#allocation5 + $0x34] sm:$0xf]
    %v79 = vld [vmem:[#allocation5 + $0x38] sm:$0xf]
    %v80 = vld [vmem:[#allocation5 + $0x3c] sm:$0xf]
    %v81 = vld [vmem:[#allocation5 + $0x40] sm:$0xf]
    %v82 = vld [vmem:[#allocation5 + $0x44] sm:$0xf]
    %v83 = vld [vmem:[#allocation5 + $0x48] sm:$0xf]
    %v84 = vld [vmem:[#allocation5 + $0x4c] sm:$0xf]
    %v85 = vld [vmem:[#allocation5 + $0x50] sm:$0xf]
    %v86 = vld [vmem:[#allocation5 + $0x54] sm:$0xf]
    %v87 = vld [vmem:[#allocation5 + $0x58] sm:$0xf]
    %v88 = vld [vmem:[#allocation5 + $0x5c] sm:$0xf]
    %v89 = vld [vmem:[#allocation5 + $0x60] sm:$0xf]
    %v90 = vld [vmem:[#allocation5 + $0x64] sm:$0xf]
    %v91 = vld [vmem:[#allocation5 + $0x68] sm:$0xf]
    %v92 = vld [vmem:[#allocation5 + $0x6c] sm:$0xf]
    %v93 = vld [vmem:[#allocation5 + $0x70] sm:$0xf]
    %v94 = vld [vmem:[#allocation5 + $0x74] sm:$0xf]
    %v95 = vld [vmem:[#allocation5 + $0x78] sm:$0xf]
    %v96 = vld [vmem:[#allocation5 + $0x7c] sm:$0xf]
    %v97 = vld [vmem:[%s2] sm:$0x1]
    %v99 = vlaneseq
    %v100 = vshrl.u32 %v99, 7
    %v101 = vsub.s32 0, %v100
    %v102 = vrot.slane %v97, %v101
    %v136 = vunpack.c.l.b16 %v65
    %v137 = vunpack.c.l.b16 %v66
    %v138 = vunpack.c.l.b16 %v67
    %v139 = vunpack.c.l.b16 %v68
    %v140 = vunpack.c.l.b16 %v69
    %v141 = vunpack.c.l.b16 %v70
    %v142 = vunpack.c.l.b16 %v71
    %v143 = vunpack.c.l.b16 %v72
    %v144 = vunpack.c.l.b16 %v73
    %v145 = vunpack.c.l.b16 %v74
    %v146 = vunpack.c.l.b16 %v75
    %v147 = vunpack.c.l.b16 %v76
    %v148 = vunpack.c.l.b16 %v77
    %v149 = vunpack.c.l.b16 %v78
    %v150 = vunpack.c.l.b16 %v79
    %v151 = vunpack.c.l.b16 %v80
    %v152 = vunpack.c.l.b16 %v81
    %v153 = vunpack.c.l.b16 %v82
    %v154 = vunpack.c.l.b16 %v83
    %v155 = vunpack.c.l.b16 %v84
    %v156 = vunpack.c.l.b16 %v85
    %v157 = vunpack.c.l.b16 %v86
    %v158 = vunpack.c.l.b16 %v87
    %v159 = vunpack.c.l.b16 %v88
    %v160 = vunpack.c.l.b16 %v89
    %v161 = vunpack.c.l.b16 %v90
    %v162 = vunpack.c.l.b16 %v91
    %v163 = vunpack.c.l.b16 %v92
    %v164 = vunpack.c.l.b16 %v93
    %v165 = vunpack.c.l.b16 %v94
    %v166 = vunpack.c.l.b16 %v95
    %v167 = vunpack.c.l.b16 %v96
    %v168 = vpack.c.b16 %v137, %v136
    %v169 = vpack.c.b16 %v139, %v138
    %v170 = vpack.c.b16 %v141, %v140
    %v171 = vpack.c.b16 %v143, %v142
    %v172 = vpack.c.b16 %v145, %v144
    %v173 = vpack.c.b16 %v147, %v146
    %v174 = vpack.c.b16 %v149, %v148
    %v175 = vpack.c.b16 %v151, %v150
    %v176 = vpack.c.b16 %v153, %v152
    %v177 = vpack.c.b16 %v155, %v154
    %v178 = vpack.c.b16 %v157, %v156
    %v179 = vpack.c.b16 %v159, %v158
    %v180 = vpack.c.b16 %v161, %v160
    %v181 = vpack.c.b16 %v163, %v162
    %v182 = vpack.c.b16 %v165, %v164
    %v183 = vpack.c.b16 %v167, %v166
    %200 = vmatprep.subr.bf16.mxu0 0
    %201 = vmatpush1.bf16.msra.mxu0 %v168
    %202 = vmatprep.subr.bf16.mxu0 0
    %203 = vmatpush1.bf16.msra.mxu0 %v169
    %204 = vmatprep.subr.bf16.mxu0 0
    %205 = vmatpush1.bf16.msra.mxu0 %v170
    %206 = vmatprep.subr.bf16.mxu0 0
    %207 = vmatpush1.bf16.msra.mxu0 %v171
    %208 = vmatprep.subr.bf16.mxu0 0
    %209 = vmatpush1.bf16.msra.mxu0 %v172
    %210 = vmatprep.subr.bf16.mxu0 0
    %211 = vmatpush1.bf16.msra.mxu0 %v173
    %212 = vmatprep.subr.bf16.mxu0 0
    %213 = vmatpush1.bf16.msra.mxu0 %v174
    %214 = vmatprep.subr.bf16.mxu0 0
    %215 = vmatpush1.bf16.msra.mxu0 %v175
    %216 = vmatprep.subr.bf16.mxu0 0
    %217 = vmatpush1.bf16.msra.mxu0 %v176
    %218 = vmatprep.subr.bf16.mxu0 0
    %219 = vmatpush1.bf16.msra.mxu0 %v177
    %220 = vmatprep.subr.bf16.mxu0 0
    %221 = vmatpush1.bf16.msra.mxu0 %v178
    %222 = vmatprep.subr.bf16.mxu0 0
    %223 = vmatpush1.bf16.msra.mxu0 %v179
    %224 = vmatprep.subr.bf16.mxu0 0
    %225 = vmatpush1.bf16.msra.mxu0 %v180
    %226 = vmatprep.subr.bf16.mxu0 0
    %227 = vmatpush1.bf16.msra.mxu0 %v181
    %228 = vmatprep.subr.bf16.mxu0 0
    %229 = vmatpush1.bf16.msra.mxu0 %v182
    %230 = vmatprep.subr.bf16.mxu0 0
    %231 = vmatpush1.bf16.msra.mxu0 %v183
    %232 = vmatprep.mubr.bf16.mxu0 %v64
    %233 = vmatmul.mubr.bf16.gmra.mrb[0].mxu0 %v63
    %v234 = vpop.f32.mrb[0].mxu0
    %v235 = vadd.f32 %v102, %v234
    %v236 = vpop.f32.mrb[0].mxu0
    %v237 = vpop.f32.mrb[0].mxu0
    %v238 = vpop.f32.mrb[0].mxu0
    %239 = vdwg.mxu0
    %v240 = vld [vmem:[%s4] sm:$0x1]
    %v242 = vlaneseq
    %v243 = vshrl.u32 %v242, 7
    %v244 = vsub.s32 0, %v243
    %v245 = vrot.slane %v240, %v244
    %v247 = vmax.f32 %v235, 0.0
    %v248 = vpack.c.bf16 %v247, %v247
    %v249 = vld [vmem:[#allocation7] sm:$0xf]
    %v250 = vld [vmem:[#allocation7 + $0x4] sm:$0xf]
    %v251 = vld [vmem:[#allocation7 + $0x8] sm:$0xf]
    %v252 = vld [vmem:[#allocation7 + $0xc] sm:$0xf]
    %v253 = vld [vmem:[#allocation7 + $0x10] sm:$0xf]
    %v254 = vld [vmem:[#allocation7 + $0x14] sm:$0xf]
    %v255 = vld [vmem:[#allocation7 + $0x18] sm:$0xf]
    %v256 = vld [vmem:[#allocation7 + $0x1c] sm:$0xf]
    %v257 = vld [vmem:[#allocation7 + $0x20] sm:$0xf]
    %v258 = vld [vmem:[#allocation7 + $0x24] sm:$0xf]
    %v259 = vld [vmem:[#allocation7 + $0x28] sm:$0xf]
    %v260 = vld [vmem:[#allocation7 + $0x2c] sm:$0xf]
    %v261 = vld [vmem:[#allocation7 + $0x30] sm:$0xf]
    %v262 = vld [vmem:[#allocation7 + $0x34] sm:$0xf]
    %v263 = vld [vmem:[#allocation7 + $0x38] sm:$0xf]
    %v264 = vld [vmem:[#allocation7 + $0x3c] sm:$0xf]
    %v281 = vunpack.c.l.b16 %v249
    %v282 = vunpack.c.l.b16 %v250
    %v283 = vunpack.c.l.b16 %v251
    %v284 = vunpack.c.l.b16 %v252
    %v285 = vunpack.c.l.b16 %v253
    %v286 = vunpack.c.l.b16 %v254
    %v287 = vunpack.c.l.b16 %v255
    %v288 = vunpack.c.l.b16 %v256
    %v289 = vunpack.c.l.b16 %v257
    %v290 = vunpack.c.l.b16 %v258
    %v291 = vunpack.c.l.b16 %v259
    %v292 = vunpack.c.l.b16 %v260
    %v293 = vunpack.c.l.b16 %v261
    %v294 = vunpack.c.l.b16 %v262
    %v295 = vunpack.c.l.b16 %v263
    %v296 = vunpack.c.l.b16 %v264
    %v297 = vpack.c.b16 %v282, %v281
    %v298 = vpack.c.b16 %v284, %v283
    %v299 = vpack.c.b16 %v286, %v285
    %v300 = vpack.c.b16 %v288, %v287
    %v301 = vpack.c.b16 %v290, %v289
    %v302 = vpack.c.b16 %v292, %v291
    %v303 = vpack.c.b16 %v294, %v293
    %v304 = vpack.c.b16 %v296, %v295
    %313 = vmatprep.subr.bf16.mxu0 0
    %314 = vmatpush1.bf16.msra.mxu0 %v297
    %315 = vmatprep.subr.bf16.mxu0 0
    %316 = vmatpush1.bf16.msra.mxu0 %v298
    %317 = vmatprep.subr.bf16.mxu0 0
    %318 = vmatpush1.bf16.msra.mxu0 %v299
    %319 = vmatprep.subr.bf16.mxu0 0
    %320 = vmatpush1.bf16.msra.mxu0 %v300
    %321 = vmatprep.subr.bf16.mxu0 0
    %322 = vmatpush1.bf16.msra.mxu0 %v301
    %323 = vmatprep.subr.bf16.mxu0 0
    %324 = vmatpush1.bf16.msra.mxu0 %v302
    %325 = vmatprep.subr.bf16.mxu0 0
    %326 = vmatpush1.bf16.msra.mxu0 %v303
    %327 = vmatprep.subr.bf16.mxu0 0
    %328 = vmatpush1.bf16.msra.mxu0 %v304
    %329 = vmatprep.subr.bf16.mxu0 0
    %330 = vmatpush1.bf16.msra.mxu0 0
    %331 = vmatprep.subr.bf16.mxu0 0
    %332 = vmatpush1.bf16.msra.mxu0 0
    %333 = vmatprep.subr.bf16.mxu0 0
    %334 = vmatpush1.bf16.msra.mxu0 0
    %335 = vmatprep.subr.bf16.mxu0 0
    %336 = vmatpush1.bf16.msra.mxu0 0
    %337 = vmatprep.subr.bf16.mxu0 0
    %338 = vmatpush1.bf16.msra.mxu0 0
    %339 = vmatprep.subr.bf16.mxu0 0
    %340 = vmatpush1.bf16.msra.mxu0 0
    %341 = vmatprep.subr.bf16.mxu0 0
    %342 = vmatpush1.bf16.msra.mxu0 0
    %343 = vmatprep.subr.bf16.mxu0 0
    %344 = vmatpush1.bf16.msra.mxu0 0
    %345 = vmatprep.mubr.bf16.mxu0 0
    %346 = vmatmul.mubr.bf16.gmra.mrb[0].mxu0 %v248
    %v347 = vpop.f32.mrb[0].mxu0
    %v348 = vadd.f32 %v245, %v347
    %v349 = vpop.f32.mrb[0].mxu0
    %v350 = vpop.f32.mrb[0].mxu0
    %v351 = vpop.f32.mrb[0].mxu0
    %352 = vdwg.mxu0
    %353 = vst [vmem:[#allocation8] sm:$0xff] %v348
    // Predicated region
    $region34: #{tpu_custom_call.1} parent=1 // pred_check
      _
    $region35: #{tpu_custom_call.1} parent=1 // pred_check_branch
      %355 = sbr.rel (0) target = $region37
    $region36: #{tpu_custom_call.1} parent=1 // pred_region
      %s357 = ssub.s32 128, 128
      %358 = vsyncadd [#allocation4], %s357
      %s360 = sshll.u32 [#allocation8], 4
      %s361 = int_to_ptr.vmem [resolvable:$true] %s360
      %363 = dma.vmem_to_hbm [thread:$0]  %s361, 128, %s5, [#allocation4]
    $region37: #{tpu_custom_call.1} parent=1 // pred_fallthru
      _
    // Predicated region
    $region38: #{tpu_custom_call.1} parent=1 // pred_check
      _
    $region39: #{tpu_custom_call.1} parent=1 // pred_check_branch
      %365 = sbr.rel (0) target = $region41
    $region40: #{tpu_custom_call.1} parent=1 // pred_region
      %366 = dma.done [#allocation4], 128
    $region41: #{tpu_custom_call.1} parent=1 // pred_fallthru
      _
    %367 = vsyncpa [#allocation3], 1
    %368 = vsyncpa [#allocation6], 1
    %369 = vsyncpa [#allocation4], 1

// kernel: tpu_custom_call.1
$region0: #{tpu_custom_call.1}
  #allocation0 [shape = 'u32[]', space=smem, size = 0x4, offset = 0x4, fixed_abs, tag = 'smem constant byte address 0x4 - core index']
  #allocation1 [shape = 'u32[144,128]{1,0:T(1,128)}', space=vmem, size = 0x12000, scoped, tag = 'internal scratch']
  %s0 = inlined_call_operand.hbm [shape: f32[8,256], index: 0, kind: input, shape index: {}]
  %s1 = inlined_call_operand.hbm [shape: bf16[256,128], index: 1, kind: input, shape index: {}]
  %s2 = inlined_call_operand.vmem [shape: f32[1,128], index: 2, kind: input, shape index: {}]
  %s3 = inlined_call_operand.hbm [shape: bf16[128,128], index: 3, kind: input, shape index: {}]
  %s4 = inlined_call_operand.vmem [shape: f32[1,128], index: 4, kind: input, shape index: {}]
  %s5 = inlined_call_operand.hbm [shape: f32[8,128], index: 5, kind: output, shape index: {}]
  %s6 = sld [smem:[#allocation0]]
  $region42: #{tpu_custom_call.1} parent=0
    _
  %s8 = ssub.s32 1, %s6
  %s9 = scalar_select 0, %s8, %s6
  $region1: #{tpu_custom_call.1} parent=0
    #allocation2 [shape = 'u8[8192]{0}', space=vmem, size = 0x2000, scoped, tag = 'input window, operand 0, single buffered']
    #allocation3 [shape = 's32[1]{0}', space=sflag, size = 0x4, scoped, tag = 'scoped memory for tpu_custom_call.1']
    #allocation4 [shape = 's32[1]{0}', space=sflag, size = 0x4, scoped, tag = 'scoped memory for tpu_custom_call.1']
    #allocation5 [shape = 'u8[65536]{0}', space=vmem, size = 0x10000, scoped, tag = 'input window, operand 1, single buffered']
    #allocation6 [shape = 's32[1]{0}', space=sflag, size = 0x4, scoped, tag = 'scoped memory for tpu_custom_call.1']
    #allocation7 [shape = 'u8[32768]{0}', space=vmem, size = 0x8000, scoped, tag = 'input window, operand 3, single buffered']
    #allocation8 [shape = 'u8[4096]{0}', space=vmem, size = 0x1000, scoped, tag = 'output window, operand 0, single buffered']
    %10 = vsyncpa [#allocation3], 0
    %11 = vsyncpa [#allocation6], 0
    %12 = vsyncpa [#allocation4], 0
    // Predicated region
    $region2: #{tpu_custom_call.1} parent=1 // pred_check
      _
    $region3: #{tpu_custom_call.1} parent=1 // pred_check_branch
      %14 = sbr.rel (0) target = $region5
    $region4: #{tpu_custom_call.1} parent=1 // pred_region
      %s16 = ssub.s32 256, 256
      %17 = vsyncadd [#allocation3], %s16
      %s19 = sshll.u32 [#allocation2], 4
      %s20 = int_to_ptr.vmem [resolvable:$true] %s19
      %22 = dma.hbm_to_vmem [thread:$0]  %s0, 256, %s20, [#allocation3]
    $region5: #{tpu_custom_call.1} parent=1 // pred_fallthru
      _
    // Predicated region
    $region6: #{tpu_custom_call.1} parent=1 // pred_check
      _
    $region7: #{tpu_custom_call.1} parent=1 // pred_check_branch
      %24 = sbr.rel (0) target = $region9
    $region8: #{tpu_custom_call.1} parent=1 // pred_region
      %s26 = ssub.s32 2048, 2048
      %27 = vsyncadd [#allocation6], %s26
      %s28 = sshll.u32 [#allocation5], 4
      %s29 = int_to_ptr.vmem [resolvable:$true] %s28
      %34 = dma.hbm_to_vmem [thread:$0]  %s1, 2048, %s29, [#allocation6], 64, 64, 4
    $region9: #{tpu_custom_call.1} parent=1 // pred_fallthru
      _
    // Predicated region
    $region10: #{tpu_custom_call.1} parent=1 // pred_check
      _
    $region11: #{tpu_custom_call.1} parent=1 // pred_check_branch
      %36 = sbr.rel (0) target = $region13
    $region12: #{tpu_custom_call.1} parent=1 // pred_region
      _
    $region13: #{tpu_custom_call.1} parent=1 // pred_fallthru
      _
    // Predicated region
    $region14: #{tpu_custom_call.1} parent=1 // pred_check
      _
    $region15: #{tpu_custom_call.1} parent=1 // pred_check_branch
      %38 = sbr.rel (0) target = $region17
    $region16: #{tpu_custom_call.1} parent=1 // pred_region
      %s40 = ssub.s32 1024, 1024
      %41 = vsyncadd [#allocation6], %s40
      %s42 = sshll.u32 [#allocation7], 4
      %s43 = int_to_ptr.vmem [resolvable:$true] %s42
      %48 = dma.hbm_to_vmem [thread:$0]  %s3, 1024, %s43, [#allocation6], 64, 64, 4
    $region17: #{tpu_custom_call.1} parent=1 // pred_fallthru
      _
    // Predicated region
    $region18: #{tpu_custom_call.1} parent=1 // pred_check
      _
    $region19: #{tpu_custom_call.1} parent=1 // pred_check_branch
      %50 = sbr.rel (0) target = $region21
    $region20: #{tpu_custom_call.1} parent=1 // pred_region
      _
    $region21: #{tpu_custom_call.1} parent=1 // pred_fallthru
      _
    // Predicated region
    $region22: #{tpu_custom_call.1} parent=1 // pred_check
      _
    $region23: #{tpu_custom_call.1} parent=1 // pred_check_branch
      %52 = sbr.rel (0) target = $region25
    $region24: #{tpu_custom_call.1} parent=1 // pred_region
      %53 = dma.done [#allocation3], 256
    $region25: #{tpu_custom_call.1} parent=1 // pred_fallthru
      _
    // Predicated region
    $region26: #{tpu_custom_call.1} parent=1 // pred_check
      _
    $region27: #{tpu_custom_call.1} parent=1 // pred_check_branch
      %55 = sbr.rel (0) target = $region29
    $region28: #{tpu_custom_call.1} parent=1 // pred_region
      %56 = dma.done [#allocation6], 2048
    $region29: #{tpu_custom_call.1} parent=1 // pred_fallthru
      _
    // Predicated region
    $region30: #{tpu_custom_call.1} parent=1 // pred_check
      _
    $region31: #{tpu_custom_call.1} parent=1 // pred_check_branch
      %58 = sbr.rel (0) target = $region33
    $region32: #{tpu_custom_call.1} parent=1 // pred_region
      %59 = dma.done [#allocation6], 1024
    $region33: #{tpu_custom_call.1} parent=1 // pred_fallthru
      _
    %v61 = vld [vmem:[#allocation2] sm:$0xff]
    %v62 = vld [vmem:[#allocation2 + $0x8] sm:$0xff]
    %v63 = vpack.c.bf16 %v61, %v61
    %v64 = vpack.c.bf16 %v62, %v62
    %v65 = vld [vmem:[#allocation5] sm:$0xf]
    %v66 = vld [vmem:[#allocation5 + $0x4] sm:$0xf]
    %v67 = vld [vmem:[#allocation5 + $0x8] sm:$0xf]
    %v68 = vld [vmem:[#allocation5 + $0xc] sm:$0xf]
    %v69 = vld [vmem:[#allocation5 + $0x10] sm:$0xf]
    %v70 = vld [vmem:[#allocation5 + $0x14] sm:$0xf]
    %v71 = vld [vmem:[#allocation5 + $0x18] sm:$0xf]
    %v72 = vld [vmem:[#allocation5 + $0x1c] sm:$0xf]
    %v73 = vld [vmem:[#allocation5 + $0x20] sm:$0xf]
    %v74 = vld [vmem:[#allocation5 + $0x24] sm:$0xf]
    %v75 = vld [vmem:[#allocation5 + $0x28] sm:$0xf]
    %v76 = vld [vmem:[#allocation5 + $0x2c] sm:$0xf]
    %v77 = vld [vmem:[#allocation5 + $0x30] sm:$0xf]
    %v78 = vld [vmem:[#allocation5 + $0x34] sm:$0xf]
    %v79 = vld [vmem:[#allocation5 + $0x38] sm:$0xf]
    %v80 = vld [vmem:[#allocation5 + $0x3c] sm:$0xf]
    %v81 = vld [vmem:[#allocation5 + $0x40] sm:$0xf]
    %v82 = vld [vmem:[#allocation5 + $0x44] sm:$0xf]
    %v83 = vld [vmem:[#allocation5 + $0x48] sm:$0xf]
    %v84 = vld [vmem:[#allocation5 + $0x4c] sm:$0xf]
    %v85 = vld [vmem:[#allocation5 + $0x50] sm:$0xf]
    %v86 = vld [vmem:[#allocation5 + $0x54] sm:$0xf]
    %v87 = vld [vmem:[#allocation5 + $0x58] sm:$0xf]
    %v88 = vld [vmem:[#allocation5 + $0x5c] sm:$0xf]
    %v89 = vld [vmem:[#allocation5 + $0x60] sm:$0xf]
    %v90 = vld [vmem:[#allocation5 + $0x64] sm:$0xf]
    %v91 = vld [vmem:[#allocation5 + $0x68] sm:$0xf]
    %v92 = vld [vmem:[#allocation5 + $0x6c] sm:$0xf]
    %v93 = vld [vmem:[#allocation5 + $0x70] sm:$0xf]
    %v94 = vld [vmem:[#allocation5 + $0x74] sm:$0xf]
    %v95 = vld [vmem:[#allocation5 + $0x78] sm:$0xf]
    %v96 = vld [vmem:[#allocation5 + $0x7c] sm:$0xf]
    %v97 = vld [vmem:[%s2] sm:$0x1]
    %v99 = vlaneseq
    %v100 = vshrl.u32 %v99, 7
    %v101 = vsub.s32 0, %v100
    %v102 = vrot.slane %v97, %v101
    %v136 = vunpack.c.l.b16 %v65
    %v137 = vunpack.c.l.b16 %v66
    %v138 = vunpack.c.l.b16 %v67
    %v139 = vunpack.c.l.b16 %v68
    %v140 = vunpack.c.l.b16 %v69
    %v141 = vunpack.c.l.b16 %v70
    %v142 = vunpack.c.l.b16 %v71
    %v143 = vunpack.c.l.b16 %v72
    %v144 = vunpack.c.l.b16 %v73
    %v145 = vunpack.c.l.b16 %v74
    %v146 = vunpack.c.l.b16 %v75
    %v147 = vunpack.c.l.b16 %v76
    %v148 = vunpack.c.l.b16 %v77
    %v149 = vunpack.c.l.b16 %v78
    %v150 = vunpack.c.l.b16 %v79
    %v151 = vunpack.c.l.b16 %v80
    %v152 = vunpack.c.l.b16 %v81
    %v153 = vunpack.c.l.b16 %v82
    %v154 = vunpack.c.l.b16 %v83
    %v155 = vunpack.c.l.b16 %v84
    %v156 = vunpack.c.l.b16 %v85
    %v157 = vunpack.c.l.b16 %v86
    %v158 = vunpack.c.l.b16 %v87
    %v159 = vunpack.c.l.b16 %v88
    %v160 = vunpack.c.l.b16 %v89
    %v161 = vunpack.c.l.b16 %v90
    %v162 = vunpack.c.l.b16 %v91
    %v163 = vunpack.c.l.b16 %v92
    %v164 = vunpack.c.l.b16 %v93
    %v165 = vunpack.c.l.b16 %v94
    %v166 = vunpack.c.l.b16 %v95
    %v167 = vunpack.c.l.b16 %v96
    %v168 = vpack.c.b16 %v137, %v136
    %v169 = vpack.c.b16 %v139, %v138
    %v170 = vpack.c.b16 %v141, %v140
    %v171 = vpack.c.b16 %v143, %v142
    %v172 = vpack.c.b16 %v145, %v144
    %v173 = vpack.c.b16 %v147, %v146
    %v174 = vpack.c.b16 %v149, %v148
    %v175 = vpack.c.b16 %v151, %v150
    %v176 = vpack.c.b16 %v153, %v152
    %v177 = vpack.c.b16 %v155, %v154
    %v178 = vpack.c.b16 %v157, %v156
    %v179 = vpack.c.b16 %v159, %v158
    %v180 = vpack.c.b16 %v161, %v160
    %v181 = vpack.c.b16 %v163, %v162
    %v182 = vpack.c.b16 %v165, %v164
    %v183 = vpack.c.b16 %v167, %v166
    %200 = vmatprep.subr.bf16.mxu0 0
    %201 = vmatpush1.bf16.msra.mxu0 %v168
    %202 = vmatprep.subr.bf16.mxu0 0
    %203 = vmatpush1.bf16.msra.mxu0 %v169
    %204 = vmatprep.subr.bf16.mxu0 0
    %205 = vmatpush1.bf16.msra.mxu0 %v170
    %206 = vmatprep.subr.bf16.mxu0 0
    %207 = vmatpush1.bf16.msra.mxu0 %v171
    %208 = vmatprep.subr.bf16.mxu0 0
    %209 = vmatpush1.bf16.msra.mxu0 %v172
    %210 = vmatprep.subr.bf16.mxu0 0
    %211 = vmatpush1.bf16.msra.mxu0 %v173
    %212 = vmatprep.subr.bf16.mxu0 0
    %213 = vmatpush1.bf16.msra.mxu0 %v174
    %214 = vmatprep.subr.bf16.mxu0 0
    %215 = vmatpush1.bf16.msra.mxu0 %v175
    %216 = vmatprep.subr.bf16.mxu0 0
    %217 = vmatpush1.bf16.msra.mxu0 %v176
    %218 = vmatprep.subr.bf16.mxu0 0
    %219 = vmatpush1.bf16.msra.mxu0 %v177
    %220 = vmatprep.subr.bf16.mxu0 0
    %221 = vmatpush1.bf16.msra.mxu0 %v178
    %222 = vmatprep.subr.bf16.mxu0 0
    %223 = vmatpush1.bf16.msra.mxu0 %v179
    %224 = vmatprep.subr.bf16.mxu0 0
    %225 = vmatpush1.bf16.msra.mxu0 %v180
    %226 = vmatprep.subr.bf16.mxu0 0
    %227 = vmatpush1.bf16.msra.mxu0 %v181
    %228 = vmatprep.subr.bf16.mxu0 0
    %229 = vmatpush1.bf16.msra.mxu0 %v182
    %230 = vmatprep.subr.bf16.mxu0 0
    %231 = vmatpush1.bf16.msra.mxu0 %v183
    %232 = vmatprep.mubr.bf16.mxu0 %v64
    %233 = vmatmul.mubr.bf16.gmra.mrb[0].mxu0 %v63
    %v234 = vpop.f32.mrb[0].mxu0
    %v235 = vadd.f32 %v102, %v234
    %v236 = vpop.f32.mrb[0].mxu0
    %v237 = vpop.f32.mrb[0].mxu0
    %v238 = vpop.f32.mrb[0].mxu0
    %239 = vdwg.mxu0
    %v240 = vld [vmem:[%s4] sm:$0x1]
    %v242 = vlaneseq
    %v243 = vshrl.u32 %v242, 7
    %v244 = vsub.s32 0, %v243
    %v245 = vrot.slane %v240, %v244
    %v247 = vmax.f32 %v235, 0.0
    %v248 = vpack.c.bf16 %v247, %v247
    %v249 = vld [vmem:[#allocation7] sm:$0xf]
    %v250 = vld [vmem:[#allocation7 + $0x4] sm:$0xf]
    %v251 = vld [vmem:[#allocation7 + $0x8] sm:$0xf]
    %v252 = vld [vmem:[#allocation7 + $0xc] sm:$0xf]
    %v253 = vld [vmem:[#allocation7 + $0x10] sm:$0xf]
    %v254 = vld [vmem:[#allocation7 + $0x14] sm:$0xf]
    %v255 = vld [vmem:[#allocation7 + $0x18] sm:$0xf]
    %v256 = vld [vmem:[#allocation7 + $0x1c] sm:$0xf]
    %v257 = vld [vmem:[#allocation7 + $0x20] sm:$0xf]
    %v258 = vld [vmem:[#allocation7 + $0x24] sm:$0xf]
    %v259 = vld [vmem:[#allocation7 + $0x28] sm:$0xf]
    %v260 = vld [vmem:[#allocation7 + $0x2c] sm:$0xf]
    %v261 = vld [vmem:[#allocation7 + $0x30] sm:$0xf]
    %v262 = vld [vmem:[#allocation7 + $0x34] sm:$0xf]
    %v263 = vld [vmem:[#allocation7 + $0x38] sm:$0xf]
    %v264 = vld [vmem:[#allocation7 + $0x3c] sm:$0xf]
    %v281 = vunpack.c.l.b16 %v249
    %v282 = vunpack.c.l.b16 %v250
    %v283 = vunpack.c.l.b16 %v251
    %v284 = vunpack.c.l.b16 %v252
    %v285 = vunpack.c.l.b16 %v253
    %v286 = vunpack.c.l.b16 %v254
    %v287 = vunpack.c.l.b16 %v255
    %v288 = vunpack.c.l.b16 %v256
    %v289 = vunpack.c.l.b16 %v257
    %v290 = vunpack.c.l.b16 %v258
    %v291 = vunpack.c.l.b16 %v259
    %v292 = vunpack.c.l.b16 %v260
    %v293 = vunpack.c.l.b16 %v261
    %v294 = vunpack.c.l.b16 %v262
    %v295 = vunpack.c.l.b16 %v263
    %v296 = vunpack.c.l.b16 %v264
    %v297 = vpack.c.b16 %v282, %v281
    %v298 = vpack.c.b16 %v284, %v283
    %v299 = vpack.c.b16 %v286, %v285
    %v300 = vpack.c.b16 %v288, %v287
    %v301 = vpack.c.b16 %v290, %v289
    %v302 = vpack.c.b16 %v292, %v291
    %v303 = vpack.c.b16 %v294, %v293
    %v304 = vpack.c.b16 %v296, %v295
    %313 = vmatprep.subr.bf16.mxu0 0
    %314 = vmatpush1.bf16.msra.mxu0 %v297
    %315 = vmatprep.subr.bf16.mxu0 0
    %316 = vmatpush1.bf16.msra.mxu0 %v298
    %317 = vmatprep.subr.bf16.mxu0 0
    %318 = vmatpush1.bf16.msra.mxu0 %v299
    %319 = vmatprep.subr.bf16.mxu0 0
    %320 = vmatpush1.bf16.msra.mxu0 %v300
    %321 = vmatprep.subr.bf16.mxu0 0
    %322 = vmatpush1.bf16.msra.mxu0 %v301
    %323 = vmatprep.subr.bf16.mxu0 0
    %324 = vmatpush1.bf16.msra.mxu0 %v302
    %325 = vmatprep.subr.bf16.mxu0 0
    %326 = vmatpush1.bf16.msra.mxu0 %v303
    %327 = vmatprep.subr.bf16.mxu0 0
    %328 = vmatpush1.bf16.msra.mxu0 %v304
    %329 = vmatprep.subr.bf16.mxu0 0
    %330 = vmatpush1.bf16.msra.mxu0 0
    %331 = vmatprep.subr.bf16.mxu0 0
    %332 = vmatpush1.bf16.msra.mxu0 0
    %333 = vmatprep.subr.bf16.mxu0 0
    %334 = vmatpush1.bf16.msra.mxu0 0
    %335 = vmatprep.subr.bf16.mxu0 0
    %336 = vmatpush1.bf16.msra.mxu0 0
    %337 = vmatprep.subr.bf16.mxu0 0
    %338 = vmatpush1.bf16.msra.mxu0 0
    %339 = vmatprep.subr.bf16.mxu0 0
    %340 = vmatpush1.bf16.msra.mxu0 0
    %341 = vmatprep.subr.bf16.mxu0 0
    %342 = vmatpush1.bf16.msra.mxu0 0
    %343 = vmatprep.subr.bf16.mxu0 0
    %344 = vmatpush1.bf16.msra.mxu0 0
    %345 = vmatprep.mubr.bf16.mxu0 0
    %346 = vmatmul.mubr.bf16.gmra.mrb[0].mxu0 %v248
    %v347 = vpop.f32.mrb[0].mxu0
    %v348 = vadd.f32 %v245, %v347
    %v349 = vpop.f32.mrb[0].mxu0
    %v350 = vpop.f32.mrb[0].mxu0
    %v351 = vpop.f32.mrb[0].mxu0
    %352 = vdwg.mxu0
    %353 = vst [vmem:[#allocation8] sm:$0xff] %v348
    // Predicated region
    $region34: #{tpu_custom_call.1} parent=1 // pred_check
      _
    $region35: #{tpu_custom_call.1} parent=1 // pred_check_branch
      %355 = sbr.rel (0) target = $region37
    $region36: #{tpu_custom_call.1} parent=1 // pred_region
      %s357 = ssub.s32 128, 128
      %358 = vsyncadd [#allocation4], %s357
      %s360 = sshll.u32 [#allocation8], 4
      %s361 = int_to_ptr.vmem [resolvable:$true] %s360
      %363 = dma.vmem_to_hbm [thread:$0]  %s361, 128, %s5, [#allocation4]
    $region37: #{tpu_custom_call.1} parent=1 // pred_fallthru
      _
    // Predicated region
    $region38: #{tpu_custom_call.1} parent=1 // pred_check
      _
    $region39: #{tpu_custom_call.1} parent=1 // pred_check_branch
      %365 = sbr.rel (0) target = $region41
    $region40: #{tpu_custom_call.1} parent=1 // pred_region
      %366 = dma.done [#allocation4], 128
    $region41: #{tpu_custom_call.1} parent=1 // pred_fallthru
      _
    %367 = vsyncpa [#allocation3], 1
    %368 = vsyncpa [#allocation6], 1
    %369 = vsyncpa [#allocation4], 1

</llo_original>
